<compile_context>
chip_gen: v6e
topology: v6e:2x2x1
jax: 0.10.0
libtpu: 0.0.40
codegen_flags: <defaults>
</compile_context>

<pallas_src>
import jax
import jax.numpy as jnp
from jax.experimental import pallas as pl
from jax.experimental.pallas import tpu as pltpu

_SUBLANE = 8
_MAX_TILE = 2048   # large-B batch tile: amortizes ~0.35us/step, ~2-3 MiB VMEM


def _round_up(x, m):
    return (x + m - 1) // m * m


def _cdiv(a, b):
    return (a + b - 1) // b


def _num_tensorcores_per_chip():
    """1 for v5e/v6e, 2 for v7x. Falls back to 1 if introspection unavailable."""
    try:
        info = pltpu.get_tpu_info()
        for attr in ("num_cores", "num_tensorcores", "tensorcores_per_chip",
                     "cores_per_chip", "core_count"):
            v = getattr(info, attr, None)
            if v:
                return int(v)
    except Exception:
        pass
    return 1


_NUM_TC = _num_tensorcores_per_chip()


def _choose_batch_tile(B):
    """Generation-aware batch tiling (static, trace-time Python).

    * Small B: one block == the whole batch (block dim == array dim is always
      legal, so a ragged B needs no padding at all).
    * 2-TC chips (v7x): split into an even number of tiles so both TensorCores
      get balanced work under dimension_semantics=("parallel",).
    * 1-TC chips (v5e/v6e): keep a single tile up to _MAX_TILE rows; splitting
      would only add pipeline-step overhead for zero parallelism gain.
    """
    if B <= 128:
        return B
    if _NUM_TC >= 2:
        ntiles = max(2, _round_up(_cdiv(B, _MAX_TILE), 2))   # even grid
        return _round_up(_cdiv(B, ntiles), _SUBLANE)
    if B <= _MAX_TILE:
        return B
    return _MAX_TILE


def _actor_kernel(x_ref, w1_ref, b1_ref, w2_ref, b2_ref, w3_ref, b3_ref, out_ref):
    # Fused Mlp(obs) -> ReLU -> Linear -> ReLU -> Deterministic head -> tanh.
    # Matmuls: bf16 on the MXU with f32 accumulation. Bias/ReLU/tanh in f32.
    x = x_ref[...].astype(jnp.bfloat16)

    h = jnp.dot(x, w1_ref[...], preferred_element_type=jnp.float32) + b1_ref[...]
    h = jnp.maximum(h, 0.0).astype(jnp.bfloat16)          # ReLU

    h = jnp.dot(h, w2_ref[...], preferred_element_type=jnp.float32) + b2_ref[...]
    h = jnp.maximum(h, 0.0).astype(jnp.bfloat16)

    a = jnp.dot(h, w3_ref[...], preferred_element_type=jnp.float32) + b3_ref[...]
    out_ref[...] = jnp.tanh(a).astype(out_ref.dtype)


def prepare_params(params):
    """One-time parameter prep (call once, NOT per forward): bf16 weights."""
    w1, b1, w2, b2, w3, b3 = params
    return (w1.astype(jnp.bfloat16), jnp.asarray(b1, jnp.float32),
            w2.astype(jnp.bfloat16), jnp.asarray(b2, jnp.float32),
            w3.astype(jnp.bfloat16), jnp.asarray(b3, jnp.float32))


@jax.jit
def deterministic_actor_forward(obs, prepared_params):
    """Fused Pallas forward. obs: [B, obs_dim] f32; prepared_params from
    prepare_params(). Returns (actions [B, action_dim], None)."""
    w1, b1, w2, b2, w3, b3 = prepared_params
    B, D = obs.shape
    H1 = w1.shape[1]
    H2 = w2.shape[1]
    A = w3.shape[1]

    batch_tile = _choose_batch_tile(B)
    grid = (_cdiv(B, batch_tile),)   # ragged tail -> Pallas-masked partial block

    # Constant-index parameter blocks: resident in VMEM across the whole grid.
    const2d = lambda shape: pl.BlockSpec(shape, lambda i: (0, 0))

    # VMEM budget: double-buffered obs/out tiles + resident params (tiny net).
    est = (2 * batch_tile * D * 4 + 2 * batch_tile * A * 4
           + 2 * 2 * (D * H1 + H1 * H2 + H2 * A)      # bf16 weights
           + 2 * 4 * (H1 + H2 + A))                   # f32 biases
    vmem_limit = int(min(max(32 << 20, 2 * est), 64 << 20))

    actions = pl.pallas_call(
        _actor_kernel,
        out_shape=jax.ShapeDtypeStruct((B, A), obs.dtype),   # true shape, no slice copy
        grid_spec=pltpu.PrefetchScalarGridSpec(
            num_scalar_prefetch=0,
            grid=grid,
            in_specs=[
                pl.BlockSpec((batch_tile, D), lambda i: (i, 0)),   # obs tile
                const2d((D, H1)), const2d((1, H1)),                # layer 1
                const2d((H1, H2)), const2d((1, H2)),               # layer 2
                const2d((H2, A)), const2d((1, A)),                 # deterministic head
            ],
            out_specs=pl.BlockSpec((batch_tile, A), lambda i: (i, 0)),
        ),
        compiler_params=pltpu.CompilerParams(
            dimension_semantics=("parallel",),
            vmem_limit_bytes=vmem_limit),
    )(obs, w1, b1, w2, b2, w3, b3)

    states = None   # rnn is None -> states pass through unchanged
    return actions, states


def init_params(key, obs_dim, hidden_sizes, action_dim):
    """Deterministic init mirroring nn.Linear default (uniform(-1/sqrt(fan_in), ...))."""
    dims = [obs_dim] + list(hidden_sizes) + [action_dim]
    params = []
    for i in range(len(dims) - 1):
        fan_in, fan_out = dims[i], dims[i + 1]
        key, kw, kb = jax.random.split(key, 3)
        bound = 1.0 / jnp.sqrt(jnp.float32(fan_in))
        w = jax.random.uniform(kw, (fan_in, fan_out), jnp.float32, -bound, bound)
        b = jax.random.uniform(kb, (1, fan_out), jnp.float32, -bound, bound)
        params += [w, b]
    return tuple(params)


def reference_forward_bf16(obs, params):
    """Pure-JAX reference with the same bf16-matmul / f32-accumulate recipe."""
    w1, b1, w2, b2, w3, b3 = params
    bf = jnp.bfloat16
    h = jnp.dot(obs.astype(bf), w1.astype(bf), preferred_element_type=jnp.float32) + b1
    h = jnp.maximum(h, 0.0).astype(bf)
    h = jnp.dot(h, w2.astype(bf), preferred_element_type=jnp.float32) + b2
    h = jnp.maximum(h, 0.0).astype(bf)
    a = jnp.dot(h, w3.astype(bf), preferred_element_type=jnp.float32) + b3
    return jnp.tanh(a)


def reference_forward_f32(obs, params):
    w1, b1, w2, b2, w3, b3 = params
    h = jnp.maximum(obs @ w1 + b1, 0.0)
    h = jnp.maximum(h @ w2 + b2, 0.0)
    return jnp.tanh(h @ w3 + b3)


if __name__ == "__main__":
    # Shapes consistent with the module: obs_dim=(16,) -> MLP branch,
    # hidden_sizes=[32, 32], action_dim=4, activation=ReLU, rnn=None.
    B, OBS_DIM, HIDDEN, ACTION_DIM = 8, 16, [32, 32], 4

    key = jax.random.PRNGKey(0)
    key, k_obs = jax.random.split(key)
    obs = jax.random.normal(k_obs, (B, OBS_DIM), dtype=jnp.float32)
    params = init_params(key, OBS_DIM, HIDDEN, ACTION_DIM)
    prepared = prepare_params(params)   # one-time prep, outside the hot path

    actions, states = deterministic_actor_forward(obs, prepared)
    actions = jax.block_until_ready(actions)
    assert actions.shape == (B, ACTION_DIM)
    assert states is None
    assert jnp.max(jnp.abs(actions - reference_forward_bf16(obs, params))) < 2e-3
    assert jnp.max(jnp.abs(actions - reference_forward_f32(obs, params))) < 5e-2

    # Ragged small batch: single block == array dim, no padding or slicing.
    key, k_obs2 = jax.random.split(key)
    obs2 = jax.random.normal(k_obs2, (10, OBS_DIM), dtype=jnp.float32)
    actions2, _ = deterministic_actor_forward(obs2, prepared)
    actions2 = jax.block_until_ready(actions2)
    assert actions2.shape == (10, ACTION_DIM)
    assert jnp.max(jnp.abs(actions2 - reference_forward_bf16(obs2, params))) < 2e-3

    # Multi-tile grid with a Pallas-masked partial tail block (no wrapper pad/slice).
    key, k_obs3 = jax.random.split(key)
    obs3 = jax.random.normal(k_obs3, (2100, OBS_DIM), dtype=jnp.float32)
    actions3, _ = deterministic_actor_forward(obs3, prepared)
    actions3 = jax.block_until_ready(actions3)
    assert actions3.shape == (2100, ACTION_DIM)
    assert jnp.max(jnp.abs(actions3 - reference_forward_bf16(obs3, params))) < 2e-3

    # TODO(synk): Cnn / Rnn branches of DeterministicActor are not exercised
    # (obs_dim is 1-D and rnn=None in this configuration).
    print("KERNEL_OK")
</pallas_src>

<mosaic_0001>
module attributes {stable_mosaic.version = 11 : i64} {
  func.func @_actor_kernel(%arg0: i32, %arg1: memref<8x16xf32, #tpu.memory_space<vmem>>, %arg2: memref<16x32xbf16, #tpu.memory_space<vmem>>, %arg3: memref<1x32xf32, #tpu.memory_space<vmem>>, %arg4: memref<32x32xbf16, #tpu.memory_space<vmem>>, %arg5: memref<1x32xf32, #tpu.memory_space<vmem>>, %arg6: memref<32x4xbf16, #tpu.memory_space<vmem>>, %arg7: memref<1x4xf32, #tpu.memory_space<vmem>>, %arg8: memref<8x4xf32, #tpu.memory_space<vmem>>) attributes {dimension_semantics = [#tpu.dimension_semantics<parallel>], iteration_bounds = array<i64: 1>, scalar_prefetch = 0 : i64, scratch_operands = 0 : i64, tpu.core_type = #tpu.core_type<tc>, window_params = [{transform_indices = @transform_0, window_bounds = array<i64: 8, 16>}, {pipeline_mode = #tpu.pipeline_mode<synchronous>, transform_indices = @transform_1, window_bounds = array<i64: 16, 32>}, {pipeline_mode = #tpu.pipeline_mode<synchronous>, transform_indices = @transform_2, window_bounds = array<i64: 1, 32>}, {pipeline_mode = #tpu.pipeline_mode<synchronous>, transform_indices = @transform_3, window_bounds = array<i64: 32, 32>}, {pipeline_mode = #tpu.pipeline_mode<synchronous>, transform_indices = @transform_4, window_bounds = array<i64: 1, 32>}, {pipeline_mode = #tpu.pipeline_mode<synchronous>, transform_indices = @transform_5, window_bounds = array<i64: 32, 4>}, {pipeline_mode = #tpu.pipeline_mode<synchronous>, transform_indices = @transform_6, window_bounds = array<i64: 1, 4>}, {transform_indices = @transform_7, window_bounds = array<i64: 8, 4>}]} {
    %c0 = arith.constant 0 : index
    %c0_0 = arith.constant 0 : index
    %0 = vector.load %arg1[%c0, %c0_0] : memref<8x16xf32, #tpu.memory_space<vmem>>, vector<8x16xf32>
    %1 = arith.truncf %0 : vector<8x16xf32> to vector<8x16xbf16>
    %c0_1 = arith.constant 0 : index
    %c0_2 = arith.constant 0 : index
    %2 = vector.load %arg2[%c0_1, %c0_2] : memref<16x32xbf16, #tpu.memory_space<vmem>>, vector<16x32xbf16>
    %cst = arith.constant dense<0.000000e+00> : vector<8x32xf32>
    %3 = tpu.matmul %1, %2, %cst {dimension_numbers = #tpu.dot_dimension_numbers<[1], [0], [0], [1], [0, 0, 1, 1], [], []>} : vector<8x16xbf16>, vector<16x32xbf16>, vector<8x32xf32> -> vector<8x32xf32>
    %c0_3 = arith.constant 0 : index
    %c0_4 = arith.constant 0 : index
    %4 = vector.load %arg3[%c0_3, %c0_4] : memref<1x32xf32, #tpu.memory_space<vmem>>, vector<1x32xf32>
    %5 = vector.broadcast %4 : vector<1x32xf32> to vector<8x32xf32>
    %6 = arith.addf %3, %5 : vector<8x32xf32>
    %cst_5 = arith.constant 0.000000e+00 : f32
    %7 = vector.broadcast %cst_5 : f32 to vector<8x32xf32>
    %8 = arith.maximumf %6, %7 : vector<8x32xf32>
    %9 = arith.truncf %8 : vector<8x32xf32> to vector<8x32xbf16>
    %c0_6 = arith.constant 0 : index
    %c0_7 = arith.constant 0 : index
    %10 = vector.load %arg4[%c0_6, %c0_7] : memref<32x32xbf16, #tpu.memory_space<vmem>>, vector<32x32xbf16>
    %cst_8 = arith.constant dense<0.000000e+00> : vector<8x32xf32>
    %11 = tpu.matmul %9, %10, %cst_8 {dimension_numbers = #tpu.dot_dimension_numbers<[1], [0], [0], [1], [0, 0, 1, 1], [], []>} : vector<8x32xbf16>, vector<32x32xbf16>, vector<8x32xf32> -> vector<8x32xf32>
    %c0_9 = arith.constant 0 : index
    %c0_10 = arith.constant 0 : index
    %12 = vector.load %arg5[%c0_9, %c0_10] : memref<1x32xf32, #tpu.memory_space<vmem>>, vector<1x32xf32>
    %13 = vector.broadcast %12 : vector<1x32xf32> to vector<8x32xf32>
    %14 = arith.addf %11, %13 : vector<8x32xf32>
    %cst_11 = arith.constant 0.000000e+00 : f32
    %15 = vector.broadcast %cst_11 : f32 to vector<8x32xf32>
    %16 = arith.maximumf %14, %15 : vector<8x32xf32>
    %17 = arith.truncf %16 : vector<8x32xf32> to vector<8x32xbf16>
    %c0_12 = arith.constant 0 : index
    %c0_13 = arith.constant 0 : index
    %18 = vector.load %arg6[%c0_12, %c0_13] : memref<32x4xbf16, #tpu.memory_space<vmem>>, vector<32x4xbf16>
    %cst_14 = arith.constant dense<0.000000e+00> : vector<8x4xf32>
    %19 = tpu.matmul %17, %18, %cst_14 {dimension_numbers = #tpu.dot_dimension_numbers<[1], [0], [0], [1], [0, 0, 1, 1], [], []>} : vector<8x32xbf16>, vector<32x4xbf16>, vector<8x4xf32> -> vector<8x4xf32>
    %c0_15 = arith.constant 0 : index
    %c0_16 = arith.constant 0 : index
    %20 = vector.load %arg7[%c0_15, %c0_16] : memref<1x4xf32, #tpu.memory_space<vmem>>, vector<1x4xf32>
    %21 = vector.broadcast %20 : vector<1x4xf32> to vector<8x4xf32>
    %22 = arith.addf %19, %21 : vector<8x4xf32>
    %23 = math.tanh %22 : vector<8x4xf32>
    %c0_17 = arith.constant 0 : index
    %c0_18 = arith.constant 0 : index
    %24 = vector.load %arg8[%c0_17, %c0_18] : memref<8x4xf32, #tpu.memory_space<vmem>>, vector<8x4xf32>
    tpu.vector_store %arg8[%c0_17, %c0_18], %23 {strides = array<i32>} : memref<8x4xf32, #tpu.memory_space<vmem>>, vector<8x4xf32>,
    return
  }
  func.func @transform_0(%arg0: i32) -> (i32, i32) {
    %c0_i32 = arith.constant 0 : i32
    %c0_i32_0 = arith.constant 0 : i32
    return %arg0, %c0_i32 : i32, i32
  }
  func.func @transform_1(%arg0: i32) -> (i32, i32) {
    %c0_i32 = arith.constant 0 : i32
    %c0_i32_0 = arith.constant 0 : i32
    %c0_i32_1 = arith.constant 0 : i32
    return %c0_i32, %c0_i32_0 : i32, i32
  }
  func.func @transform_2(%arg0: i32) -> (i32, i32) {
    %c0_i32 = arith.constant 0 : i32
    %c0_i32_0 = arith.constant 0 : i32
    %c0_i32_1 = arith.constant 0 : i32
    return %c0_i32, %c0_i32_0 : i32, i32
  }
  func.func @transform_3(%arg0: i32) -> (i32, i32) {
    %c0_i32 = arith.constant 0 : i32
    %c0_i32_0 = arith.constant 0 : i32
    %c0_i32_1 = arith.constant 0 : i32
    return %c0_i32, %c0_i32_0 : i32, i32
  }
  func.func @transform_4(%arg0: i32) -> (i32, i32) {
    %c0_i32 = arith.constant 0 : i32
    %c0_i32_0 = arith.constant 0 : i32
    %c0_i32_1 = arith.constant 0 : i32
    return %c0_i32, %c0_i32_0 : i32, i32
  }
  func.func @transform_5(%arg0: i32) -> (i32, i32) {
    %c0_i32 = arith.constant 0 : i32
    %c0_i32_0 = arith.constant 0 : i32
    %c0_i32_1 = arith.constant 0 : i32
    return %c0_i32, %c0_i32_0 : i32, i32
  }
  func.func @transform_6(%arg0: i32) -> (i32, i32) {
    %c0_i32 = arith.constant 0 : i32
    %c0_i32_0 = arith.constant 0 : i32
    %c0_i32_1 = arith.constant 0 : i32
    return %c0_i32, %c0_i32_0 : i32, i32
  }
  func.func @transform_7(%arg0: i32) -> (i32, i32) {
    %c0_i32 = arith.constant 0 : i32
    %c0_i32_0 = arith.constant 0 : i32
    return %arg0, %c0_i32 : i32, i32
  }
}

</mosaic_0001>

<llo_original>
// kernel: deterministic_actor_forward.1
$region0: #{deterministic_actor_forward.1}
  #allocation0 [shape = 'u32[]', space=smem, size = 0x4, offset = 0x4, fixed_abs, tag = 'smem constant byte address 0x4 - core index']
  #allocation1 [shape = 'u32[144,128]{1,0:T(1,128)}', space=vmem, size = 0x12000, scoped, tag = 'internal scratch']
  %s0 = inlined_call_operand.hbm [shape: f32[8,16], index: 0, kind: input, shape index: {}]
  %s1 = inlined_call_operand.hbm [shape: bf16[16,32], index: 1, kind: input, shape index: {}]
  %s2 = inlined_call_operand.vmem [shape: f32[1,32], index: 2, kind: input, shape index: {}]
  %s3 = inlined_call_operand.vmem [shape: bf16[32,32], index: 3, kind: input, shape index: {}]
  %s4 = inlined_call_operand.vmem [shape: f32[1,32], index: 4, kind: input, shape index: {}]
  %s5 = inlined_call_operand.vmem [shape: bf16[32,4], index: 5, kind: input, shape index: {}]
  %s6 = inlined_call_operand.vmem [shape: f32[1,4], index: 6, kind: input, shape index: {}]
  %s7 = inlined_call_operand.vmem [shape: f32[8,4], index: 7, kind: output, shape index: {}]
  %s8 = sld [smem:[#allocation0]]
  $region46: #{deterministic_actor_forward.1} parent=0
    _
  %s10 = ssub.s32 1, %s8
  %s11 = scalar_select 0, %s10, %s8
  $region1: #{deterministic_actor_forward.1} parent=0
    #allocation2 [shape = 'u8[4096]{0}', space=vmem, size = 0x1000, scoped, tag = 'input window, operand 0, single buffered']
    #allocation3 [shape = 's32[1]{0}', space=sflag, size = 0x4, scoped, tag = 'scoped memory for deterministic_actor_forward.1']
    #allocation4 [shape = 'u8[4096]{0}', space=vmem, size = 0x1000, scoped, tag = 'input window, operand 1, single buffered']
    #allocation5 [shape = 's32[1]{0}', space=sflag, size = 0x4, scoped, tag = 'scoped memory for deterministic_actor_forward.1']
    %12 = vsyncpa [#allocation3], 0
    %13 = vsyncpa [#allocation5], 0
    // Predicated region
    $region2: #{deterministic_actor_forward.1} parent=1 // pred_check
      _
    $region3: #{deterministic_actor_forward.1} parent=1 // pred_check_branch
      %15 = sbr.rel (0) target = $region5
    $region4: #{deterministic_actor_forward.1} parent=1 // pred_region
      %s17 = ssub.s32 128, 128
      %18 = vsyncadd [#allocation3], %s17
      %s20 = sshll.u32 [#allocation2], 4
      %s21 = int_to_ptr.vmem [resolvable:$true] %s20
      %23 = dma.hbm_to_vmem [thread:$0]  %s0, 128, %s21, [#allocation3]
    $region5: #{deterministic_actor_forward.1} parent=1 // pred_fallthru
      _
    // Predicated region
    $region6: #{deterministic_actor_forward.1} parent=1 // pred_check
      _
    $region7: #{deterministic_actor_forward.1} parent=1 // pred_check_branch
      %25 = sbr.rel (0) target = $region9
    $region8: #{deterministic_actor_forward.1} parent=1 // pred_region
      %s27 = ssub.s32 128, 128
      %28 = vsyncadd [#allocation5], %s27
      %s29 = sshll.u32 [#allocation4], 4
      %s30 = int_to_ptr.vmem [resolvable:$true] %s29
      %35 = dma.hbm_to_vmem [thread:$0]  %s1, 128, %s30, [#allocation5], 64, 64, 4
    $region9: #{deterministic_actor_forward.1} parent=1 // pred_fallthru
      _
    // Predicated region
    $region10: #{deterministic_actor_forward.1} parent=1 // pred_check
      _
    $region11: #{deterministic_actor_forward.1} parent=1 // pred_check_branch
      %37 = sbr.rel (0) target = $region13
    $region12: #{deterministic_actor_forward.1} parent=1 // pred_region
      _
    $region13: #{deterministic_actor_forward.1} parent=1 // pred_fallthru
      _
    // Predicated region
    $region14: #{deterministic_actor_forward.1} parent=1 // pred_check
      _
    $region15: #{deterministic_actor_forward.1} parent=1 // pred_check_branch
      %39 = sbr.rel (0) target = $region17
    $region16: #{deterministic_actor_forward.1} parent=1 // pred_region
      _
    $region17: #{deterministic_actor_forward.1} parent=1 // pred_fallthru
      _
    // Predicated region
    $region18: #{deterministic_actor_forward.1} parent=1 // pred_check
      _
    $region19: #{deterministic_actor_forward.1} parent=1 // pred_check_branch
      %41 = sbr.rel (0) target = $region21
    $region20: #{deterministic_actor_forward.1} parent=1 // pred_region
      _
    $region21: #{deterministic_actor_forward.1} parent=1 // pred_fallthru
      _
    // Predicated region
    $region22: #{deterministic_actor_forward.1} parent=1 // pred_check
      _
    $region23: #{deterministic_actor_forward.1} parent=1 // pred_check_branch
      %43 = sbr.rel (0) target = $region25
    $region24: #{deterministic_actor_forward.1} parent=1 // pred_region
      _
    $region25: #{deterministic_actor_forward.1} parent=1 // pred_fallthru
      _
    // Predicated region
    $region26: #{deterministic_actor_forward.1} parent=1 // pred_check
      _
    $region27: #{deterministic_actor_forward.1} parent=1 // pred_check_branch
      %45 = sbr.rel (0) target = $region29
    $region28: #{deterministic_actor_forward.1} parent=1 // pred_region
      _
    $region29: #{deterministic_actor_forward.1} parent=1 // pred_fallthru
      _
    // Predicated region
    $region30: #{deterministic_actor_forward.1} parent=1 // pred_check
      _
    $region31: #{deterministic_actor_forward.1} parent=1 // pred_check_branch
      %47 = sbr.rel (0) target = $region33
    $region32: #{deterministic_actor_forward.1} parent=1 // pred_region
      %48 = dma.done [#allocation3], 128
    $region33: #{deterministic_actor_forward.1} parent=1 // pred_fallthru
      _
    // Predicated region
    $region34: #{deterministic_actor_forward.1} parent=1 // pred_check
      _
    $region35: #{deterministic_actor_forward.1} parent=1 // pred_check_branch
      %50 = sbr.rel (0) target = $region37
    $region36: #{deterministic_actor_forward.1} parent=1 // pred_region
      %51 = dma.done [#allocation5], 128
    $region37: #{deterministic_actor_forward.1} parent=1 // pred_fallthru
      _
    %v53 = vld [vmem:[#allocation2] sm:$0xff]
    %v54 = vpack.c.bf16 %v53, %v53
    %v55 = vld [vmem:[#allocation4] sm:$0xf]
    %v56 = vld [vmem:[#allocation4 + $0x4] sm:$0xf]
    %v57 = vld [vmem:[%s2] sm:$0x1]
    %v59 = vlaneseq
    %v60 = vshrl.u32 %v59, 7
    %v61 = vsub.s32 0, %v60
    %v62 = vrot.slane %v57, %v61
    %v66 = vunpack.c.l.b16 %v55
    %v67 = vunpack.c.l.b16 %v56
    %v68 = vpack.c.b16 %v67, %v66
    %vm70 = vcmask 130048
    %v72 = vsel %vm70, %v54, 0
    %74 = vmatprep.subr.bf16.mxu0 0
    %75 = vmatpush1.bf16.msra.mxu0 0
    %76 = vmatprep.subr.bf16.mxu0 0
    %77 = vmatpush1.bf16.msra.mxu0 0
    %78 = vmatprep.subr.bf16.mxu0 0
    %79 = vmatpush1.bf16.msra.mxu0 0
    %80 = vmatprep.subr.bf16.mxu0 0
    %81 = vmatpush1.bf16.msra.mxu0 0
    %82 = vmatprep.subr.bf16.mxu0 0
    %83 = vmatpush1.bf16.msra.mxu0 0
    %84 = vmatprep.subr.bf16.mxu0 0
    %85 = vmatpush1.bf16.msra.mxu0 0
    %86 = vmatprep.subr.bf16.mxu0 0
    %87 = vmatpush1.bf16.msra.mxu0 0
    %88 = vmatprep.subr.bf16.mxu0 0
    %89 = vmatpush1.bf16.msra.mxu0 %v68
    %90 = vmatprep.subr.bf16.mxu0 0
    %91 = vmatpush2.bf16.msra.mxu0 0
    %92 = vmatprep.subr.bf16.mxu0 0
    %93 = vmatpush2.bf16.msra.mxu0 0
    %94 = vmatprep.subr.bf16.mxu0 0
    %95 = vmatpush2.bf16.msra.mxu0 0
    %96 = vmatprep.subr.bf16.mxu0 0
    %97 = vmatpush2.bf16.msra.mxu0 0
    %98 = vmatprep.subr.bf16.mxu0 0
    %99 = vmatpush2.bf16.msra.mxu0 0
    %100 = vmatprep.subr.bf16.mxu0 0
    %101 = vmatpush2.bf16.msra.mxu0 0
    %102 = vmatprep.subr.bf16.mxu0 0
    %103 = vmatpush2.bf16.msra.mxu0 0
    %104 = vmatprep.subr.bf16.mxu0 0
    %105 = vmatpush2.bf16.msra.mxu0 0
    %106 = vmatprep.mubr.bf16.mxu0 0
    %107 = vmatmul.mubr.bf16.gmra.mxu0 %v72
    %v108 = vpop.f32.mrf.mxu0
    %v109 = vadd.f32 %v62, %v108
    %v110 = vpop.f32.mrf.mxu0
    %v111 = vpop.f32.mrf.mxu0
    %v112 = vpop.f32.mrf.mxu0
    %113 = vdwg.mxu0
    %v114 = vmax.f32 %v109, 0.0
    %v115 = vpack.c.bf16 %v114, %v114
    %v116 = vld [vmem:[%s3] sm:$0xf]
    %v117 = vld [vmem:[%s3 + $0x4] sm:$0xf]
    %v118 = vld [vmem:[%s3 + $0x8] sm:$0xf]
    %v119 = vld [vmem:[%s3 + $0xc] sm:$0xf]
    %v120 = vld [vmem:[%s4] sm:$0x1]
    %v122 = vlaneseq
    %v123 = vshrl.u32 %v122, 7
    %v124 = vsub.s32 0, %v123
    %v125 = vrot.slane %v120, %v124
    %v131 = vunpack.c.l.b16 %v116
    %v132 = vunpack.c.l.b16 %v117
    %v133 = vunpack.c.l.b16 %v118
    %v134 = vunpack.c.l.b16 %v119
    %v135 = vpack.c.b16 %v132, %v131
    %v136 = vpack.c.b16 %v134, %v133
    %vm139 = vcmask 261120
    %v141 = vsel %vm139, %v115, 0
    %143 = vmatprep.subr.bf16.mxu0 0
    %144 = vmatpush1.bf16.msra.mxu0 0
    %145 = vmatprep.subr.bf16.mxu0 0
    %146 = vmatpush1.bf16.msra.mxu0 0
    %147 = vmatprep.subr.bf16.mxu0 0
    %148 = vmatpush1.bf16.msra.mxu0 0
    %149 = vmatprep.subr.bf16.mxu0 0
    %150 = vmatpush1.bf16.msra.mxu0 0
    %151 = vmatprep.subr.bf16.mxu0 0
    %152 = vmatpush1.bf16.msra.mxu0 0
    %153 = vmatprep.subr.bf16.mxu0 0
    %154 = vmatpush1.bf16.msra.mxu0 0
    %155 = vmatprep.subr.bf16.mxu0 0
    %156 = vmatpush1.bf16.msra.mxu0 %v136
    %157 = vmatprep.subr.bf16.mxu0 0
    %158 = vmatpush1.bf16.msra.mxu0 %v135
    %159 = vmatprep.subr.bf16.mxu0 0
    %160 = vmatpush2.bf16.msra.mxu0 0
    %161 = vmatprep.subr.bf16.mxu0 0
    %162 = vmatpush2.bf16.msra.mxu0 0
    %163 = vmatprep.subr.bf16.mxu0 0
    %164 = vmatpush2.bf16.msra.mxu0 0
    %165 = vmatprep.subr.bf16.mxu0 0
    %166 = vmatpush2.bf16.msra.mxu0 0
    %167 = vmatprep.subr.bf16.mxu0 0
    %168 = vmatpush2.bf16.msra.mxu0 0
    %169 = vmatprep.subr.bf16.mxu0 0
    %170 = vmatpush2.bf16.msra.mxu0 0
    %171 = vmatprep.subr.bf16.mxu0 0
    %172 = vmatpush2.bf16.msra.mxu0 0
    %173 = vmatprep.subr.bf16.mxu0 0
    %174 = vmatpush2.bf16.msra.mxu0 0
    %175 = vmatprep.mubr.bf16.mxu0 0
    %176 = vmatmul.mubr.bf16.gmra.mxu0 %v141
    %v177 = vpop.f32.mrf.mxu0
    %v178 = vadd.f32 %v125, %v177
    %v179 = vpop.f32.mrf.mxu0
    %v180 = vpop.f32.mrf.mxu0
    %v181 = vpop.f32.mrf.mxu0
    %182 = vdwg.mxu0
    %v183 = vmax.f32 %v178, 0.0
    %v184 = vpack.c.bf16 %v183, %v183
    %v185 = vld [vmem:[%s5] sm:$0xf]
    %v186 = vld [vmem:[%s5 + $0x4] sm:$0xf]
    %v187 = vld [vmem:[%s5 + $0x8] sm:$0xf]
    %v188 = vld [vmem:[%s5 + $0xc] sm:$0xf]
    %v189 = vld [vmem:[%s6] sm:$0x1]
    %v191 = vlaneseq
    %v192 = vshrl.u32 %v191, 7
    %v193 = vsub.s32 0, %v192
    %v194 = vrot.slane %v189, %v193
    %v200 = vunpack.c.l.b16 %v185
    %v201 = vunpack.c.l.b16 %v186
    %v202 = vunpack.c.l.b16 %v187
    %v203 = vunpack.c.l.b16 %v188
    %v204 = vpack.c.b16 %v201, %v200
    %v205 = vpack.c.b16 %v203, %v202
    %v209 = vsel %vm139, %v184, 0
    %211 = vmatprep.subr.bf16.mxu0 0
    %212 = vmatpush1.bf16.msra.mxu0 0
    %213 = vmatprep.subr.bf16.mxu0 0
    %214 = vmatpush1.bf16.msra.mxu0 0
    %215 = vmatprep.subr.bf16.mxu0 0
    %216 = vmatpush1.bf16.msra.mxu0 0
    %217 = vmatprep.subr.bf16.mxu0 0
    %218 = vmatpush1.bf16.msra.mxu0 0
    %219 = vmatprep.subr.bf16.mxu0 0
    %220 = vmatpush1.bf16.msra.mxu0 0
    %221 = vmatprep.subr.bf16.mxu0 0
    %222 = vmatpush1.bf16.msra.mxu0 0
    %223 = vmatprep.subr.bf16.mxu0 0
    %224 = vmatpush1.bf16.msra.mxu0 %v205
    %225 = vmatprep.subr.bf16.mxu0 0
    %226 = vmatpush1.bf16.msra.mxu0 %v204
    %227 = vmatprep.subr.bf16.mxu0 0
    %228 = vmatpush2.bf16.msra.mxu0 0
    %229 = vmatprep.subr.bf16.mxu0 0
    %230 = vmatpush2.bf16.msra.mxu0 0
    %231 = vmatprep.subr.bf16.mxu0 0
    %232 = vmatpush2.bf16.msra.mxu0 0
    %233 = vmatprep.subr.bf16.mxu0 0
    %234 = vmatpush2.bf16.msra.mxu0 0
    %235 = vmatprep.subr.bf16.mxu0 0
    %236 = vmatpush2.bf16.msra.mxu0 0
    %237 = vmatprep.subr.bf16.mxu0 0
    %238 = vmatpush2.bf16.msra.mxu0 0
    %239 = vmatprep.subr.bf16.mxu0 0
    %240 = vmatpush2.bf16.msra.mxu0 0
    %241 = vmatprep.subr.bf16.mxu0 0
    %242 = vmatpush2.bf16.msra.mxu0 0
    %243 = vmatprep.mubr.bf16.mxu0 0
    %244 = vmatmul.mubr.bf16.gmra.mxu0 %v209
    %v245 = vpop.f32.mrf.mxu0
    %v246 = vadd.f32 %v194, %v245
    %v247 = vpop.f32.mrf.mxu0
    %v248 = vpop.f32.mrf.mxu0
    %v249 = vpop.f32.mrf.mxu0
    %250 = vdwg.mxu0
    %v251 = vtanh.pop %v246
    %vm252 = vcmask 31744
    %253 = vst.msk [vmem:[%s7] sm:$0xff] %vm252, %v251
    // Predicated region
    $region38: #{deterministic_actor_forward.1} parent=1 // pred_check
      _
    $region39: #{deterministic_actor_forward.1} parent=1 // pred_check_branch
      %255 = sbr.rel (0) target = $region41
    $region40: #{deterministic_actor_forward.1} parent=1 // pred_region
      _
    $region41: #{deterministic_actor_forward.1} parent=1 // pred_fallthru
      _
    // Predicated region
    $region42: #{deterministic_actor_forward.1} parent=1 // pred_check
      _
    $region43: #{deterministic_actor_forward.1} parent=1 // pred_check_branch
      %257 = sbr.rel (0) target = $region45
    $region44: #{deterministic_actor_forward.1} parent=1 // pred_region
      _
    $region45: #{deterministic_actor_forward.1} parent=1 // pred_fallthru
      _
    %258 = vsyncpa [#allocation3], 1
    %259 = vsyncpa [#allocation5], 1

</llo_original>
